<compile_context>
chip_gen: v7x
topology: tpu7x:2x2x1
jax: 0.10.0
libtpu: 0.0.40
codegen_flags: <defaults>
</compile_context>

<pallas_src>
import jax
import jax.numpy as jnp
from jax.experimental import pallas as pl
from jax.experimental.pallas import tpu as pltpu

_MIB = 1024 * 1024


def _ceil_to(a: int, m: int) -> int:
    return ((a + m - 1) // m) * m


def _pad2d(a, shape, dtype):
    """Zero-pad a 2-D array to `shape` and cast to `dtype` (no-op if already there)."""
    if tuple(a.shape) == tuple(shape) and a.dtype == jnp.dtype(dtype):
        return a
    out = jnp.zeros(shape, dtype)
    return out.at[: a.shape[0], : a.shape[1]].set(a.astype(dtype))


def _vmem_capacity_bytes() -> int:
    try:
        return int(pltpu.get_tpu_info().vmem_capacity_bytes)
    except Exception:
        return 128 * _MIB  # v5e/v6e default; v7x reports 64 MiB per TC


def _divisor_tile(pref: int, total: int, mult: int) -> int:
    """Largest multiple of `mult` <= pref that evenly divides `total`
    (`total` is itself a multiple of `mult`)."""
    t = max(mult, min((pref // mult) * mult, total))
    while total % t != 0:
        t -= mult
    return t


# ----------------------------------------------------------------------------- kernel
def ffn_kernel(x_ref, w1_ref, b1_ref, w2_ref, b2_ref, o_ref, acc_ref):
    h_idx = pl.program_id(1)

    # GEMM 1 panel: (tm, Dp) @ (Dp, th) on the MXU, f32 accumulation.
    h = jnp.dot(x_ref[...], w1_ref[...], preferred_element_type=jnp.float32)
    h = jnp.maximum(h + b1_ref[...], 0.0)                 # bias + ReLU in f32 (VPU)
    # GEMM 2 partial: (tm, th) @ (th, Dp); cast intermediate so it also runs at
    # bf16 MXU rate.
    part = jnp.dot(h.astype(w2_ref.dtype), w2_ref[...],
                   preferred_element_type=jnp.float32)

    @pl.when(h_idx == 0)
    def _first():                      # write-through: no zero-init + RMW pass
        acc_ref[...] = part

    @pl.when(h_idx > 0)
    def _accum():
        acc_ref[...] += part

    @pl.when(h_idx == pl.num_programs(1) - 1)
    def _finalize():
        o_ref[...] = (acc_ref[...] + b2_ref[...]).astype(o_ref.dtype)


# ----------------------------------------------------------------------------- wrappers
def prepare_ffn_params(w1, b1, w2, b2, compute_dtype=jnp.bfloat16):
    """Pad/cast weights & biases to lane-aligned (multiple-of-128) layout once,
    outside the per-call hot path."""
    D, H = w1.shape
    Dp, Hp = _ceil_to(D, 128), _ceil_to(H, 128)
    return {
        "w1": _pad2d(w1, (Dp, Hp), compute_dtype),
        "b1": _pad2d(jnp.reshape(b1, (1, H)), (1, Hp), jnp.float32),
        "w2": _pad2d(w2, (Hp, Dp), compute_dtype),
        "b2": _pad2d(jnp.reshape(b2, (1, D)), (1, Dp), jnp.float32),
        "D": D,
        "H": H,
    }


def feed_forward(x2d, prepared, *, tm=None, th=None, out_dtype=None):
    """x2d: (M, D). prepared: output of prepare_ffn_params. Returns (M, D)."""
    M, D = x2d.shape
    assert D == prepared["D"], "hidden dim mismatch"
    w1_p, b1_p, w2_p, b2_p = prepared["w1"], prepared["b1"], prepared["w2"], prepared["b2"]
    Dp, Hp = w1_p.shape
    cdt = w1_p.dtype                                  # MXU operand dtype (bf16)
    out_dtype = x2d.dtype if out_dtype is None else out_dtype

    vmem_cap = _vmem_capacity_bytes()
    small_vmem = vmem_cap <= 80 * _MIB                # v7x-like: 64 MiB per TC, 2 TCs
    if tm is None:
        tm = 768 if small_vmem else 1024              # roofline-sized M tiles
    if th is None:
        th = 1024
    single_buffer_x = small_vmem and hasattr(pl, "Buffered")

    # --- M tiling (rows): pad per call, keep tiles a multiple of 16 sublanes.
    tm_eff = _ceil_to(min(tm, _ceil_to(M, 16)), 16)
    if small_vmem:
        # Keep the number of M tiles even so the 'parallel' axis shards evenly
        # across v7x's 2 TensorCores.
        n_m = -(-M // tm_eff)
        if n_m > 1 and n_m % 2 == 1:
            n_m += 1
            tm_eff = _ceil_to(-(-M // n_m), 16)

    # --- H tiling: largest lane-aligned tile that evenly divides Hp.
    th_eff = _divisor_tile(th, Hp, 128)

    # --- VMEM budget (generation-aware), shrink tiles to fit.
    wsz = jnp.dtype(cdt).itemsize
    osz = jnp.dtype(out_dtype).itemsize
    x_bufs = 1 if single_buffer_x else 2

    def est(tm_, th_):
        return (x_bufs * tm_ * Dp * wsz       # x tile(s)
                + 2 * tm_ * Dp * osz          # output tile (double-buffered)
                + tm_ * Dp * 4                # f32 accumulator scratch
                + 2 * Dp * th_ * wsz          # W1 panel (double-buffered)
                + 2 * th_ * Dp * wsz          # W2 panel (double-buffered)
                + 2 * (th_ + Dp) * 4)         # biases (f32)

    budget = max(32 * _MIB, min(vmem_cap - 8 * _MIB, int(0.88 * vmem_cap)))
    while est(tm_eff, th_eff) > budget and th_eff > 128:
        th_eff = _divisor_tile(max(th_eff // 2, 128), Hp, 128)
    while est(tm_eff, th_eff) > budget and tm_eff > 16:
        tm_eff = max(_ceil_to(tm_eff // 2, 16), 16)
    Mp = _ceil_to(M, tm_eff)
    vmem_limit = int(min(max(est(tm_eff, th_eff) + 8 * _MIB, 32 * _MIB), budget))

    x_p = _pad2d(x2d, (Mp, Dp), cdt)
    grid = (Mp // tm_eff, Hp // th_eff)

    def x_spec():
        if single_buffer_x:
            try:   # single-buffer: block index only changes on the outer i axis
                return pl.BlockSpec((tm_eff, Dp), lambda i, h: (i, 0),
                                    pipeline_mode=pl.Buffered(1))
            except TypeError:
                pass
        return pl.BlockSpec((tm_eff, Dp), lambda i, h: (i, 0))

    out = pl.pallas_call(
        ffn_kernel,
        out_shape=jax.ShapeDtypeStruct((Mp, Dp), out_dtype),
        grid_spec=pltpu.PrefetchScalarGridSpec(
            num_scalar_prefetch=0,
            grid=grid,
            in_specs=[
                x_spec(),                                           # x tile
                pl.BlockSpec((Dp, th_eff), lambda i, h: (0, h)),    # W1 panel
                pl.BlockSpec((1, th_eff), lambda i, h: (0, h)),     # b1 panel
                pl.BlockSpec((th_eff, Dp), lambda i, h: (h, 0)),    # W2 panel
                pl.BlockSpec((1, Dp), lambda i, h: (0, 0)),         # b2 (finalize)
            ],
            out_specs=pl.BlockSpec((tm_eff, Dp), lambda i, h: (i, 0)),
            scratch_shapes=[pltpu.VMEM((tm_eff, Dp), jnp.float32)],
        ),
        compiler_params=pltpu.CompilerParams(
            dimension_semantics=("parallel", "arbitrary"),
            vmem_limit_bytes=vmem_limit,
        ),
    )(x_p, w1_p, b1_p, w2_p, b2_p)

    return out[:M, :D]


def feed_forward_layer(x_bsd, params, **kw):
    """x_bsd: (B, S, D). params: raw (w1, b1, w2, b2) or prepare_ffn_params output."""
    B, S, D = x_bsd.shape
    prepared = params if isinstance(params, dict) else prepare_ffn_params(*params)
    y2d = feed_forward(x_bsd.reshape(B * S, D), prepared, **kw)
    return y2d.reshape(B, S, D)


def init_params(key, hidden_dim, dtype=jnp.bfloat16):
    """Deterministic init matching nn.Linear shapes (weights stored transposed)."""
    k1, k2, k3, k4 = jax.random.split(key, 4)
    d, h = hidden_dim, hidden_dim * 4
    w1 = (jax.random.uniform(k1, (d, h), jnp.float32, -1.0, 1.0) / jnp.sqrt(d)).astype(dtype)
    b1 = (jax.random.uniform(k2, (h,), jnp.float32, -1.0, 1.0) / jnp.sqrt(d)).astype(dtype)
    w2 = (jax.random.uniform(k3, (h, d), jnp.float32, -1.0, 1.0) / jnp.sqrt(h)).astype(dtype)
    b2 = (jax.random.uniform(k4, (d,), jnp.float32, -1.0, 1.0) / jnp.sqrt(h)).astype(dtype)
    return w1, b1, w2, b2


if __name__ == "__main__":
    # Small shapes consistent with the module: batch=2, seq=8, hidden=32
    # (FFN inner dim = 128). dropout_rate in the spec is unused by forward().
    B, S, D = 2, 8, 32
    key = jax.random.PRNGKey(0)
    kx, kp = jax.random.split(key)
    x = jax.random.normal(kx, (B, S, D), jnp.float32)
    w1, b1, w2, b2 = init_params(kp, D, dtype=jnp.bfloat16)

    prepared = prepare_ffn_params(w1, b1, w2, b2)   # pad/cast once, outside hot path
    y = feed_forward_layer(x, prepared)
    jax.block_until_ready(y)

    # Pure-JAX reference (same bf16 operands, f32 accumulation).
    xr = x.reshape(-1, D).astype(jnp.bfloat16)
    hh = jnp.dot(xr, w1, preferred_element_type=jnp.float32) + b1.astype(jnp.float32)
    hh = jnp.maximum(hh, 0.0)
    ref = (jnp.dot(hh.astype(jnp.bfloat16), w2, preferred_element_type=jnp.float32)
           + b2.astype(jnp.float32)).reshape(B, S, D)

    assert y.shape == (B, S, D) and y.dtype == x.dtype
    assert jnp.allclose(y.astype(jnp.float32), ref, atol=2e-2, rtol=2e-2), \
        "mismatch vs reference"
    print("KERNEL_OK")
</pallas_src>

<mosaic_0001>
module attributes {stable_mosaic.version = 11 : i64} {
  func.func @ffn_kernel(%arg0: i32, %arg1: i32, %arg2: memref<16x128xbf16, #tpu.memory_space<vmem>>, %arg3: memref<128x128xbf16, #tpu.memory_space<vmem>>, %arg4: memref<1x128xf32, #tpu.memory_space<vmem>>, %arg5: memref<128x128xbf16, #tpu.memory_space<vmem>>, %arg6: memref<1x128xf32, #tpu.memory_space<vmem>>, %arg7: memref<16x128xf32, #tpu.memory_space<vmem>>, %arg8: memref<16x128xf32, #tpu.memory_space<vmem>>) attributes {dimension_semantics = [#tpu.dimension_semantics<parallel>, #tpu.dimension_semantics<arbitrary>], iteration_bounds = array<i64: 1, 1>, scalar_prefetch = 0 : i64, scratch_operands = 1 : i64, tpu.core_type = #tpu.core_type<tc>, window_params = [{transform_indices = @transform_0, window_bounds = array<i64: 16, 128>}, {transform_indices = @transform_1, window_bounds = array<i64: 128, 128>}, {transform_indices = @transform_2, window_bounds = array<i64: 1, 128>}, {transform_indices = @transform_3, window_bounds = array<i64: 128, 128>}, {pipeline_mode = #tpu.pipeline_mode<synchronous>, transform_indices = @transform_4, window_bounds = array<i64: 1, 128>}, {transform_indices = @transform_5, window_bounds = array<i64: 16, 128>}]} {
    %c0 = arith.constant 0 : index
    %c0_0 = arith.constant 0 : index
    %0 = vector.load %arg2[%c0, %c0_0] : memref<16x128xbf16, #tpu.memory_space<vmem>>, vector<16x128xbf16>
    %c0_1 = arith.constant 0 : index
    %c0_2 = arith.constant 0 : index
    %1 = vector.load %arg3[%c0_1, %c0_2] : memref<128x128xbf16, #tpu.memory_space<vmem>>, vector<128x128xbf16>
    %cst = arith.constant dense<0.000000e+00> : vector<16x128xf32>
    %2 = tpu.matmul %0, %1, %cst {dimension_numbers = #tpu.dot_dimension_numbers<[1], [0], [0], [1], [0, 0, 1, 1], [], []>} : vector<16x128xbf16>, vector<128x128xbf16>, vector<16x128xf32> -> vector<16x128xf32>
    %c0_3 = arith.constant 0 : index
    %c0_4 = arith.constant 0 : index
    %3 = vector.load %arg4[%c0_3, %c0_4] : memref<1x128xf32, #tpu.memory_space<vmem>>, vector<1x128xf32>
    %4 = vector.broadcast %3 : vector<1x128xf32> to vector<16x128xf32>
    %5 = arith.addf %2, %4 : vector<16x128xf32>
    %cst_5 = arith.constant 0.000000e+00 : f32
    %6 = vector.broadcast %cst_5 : f32 to vector<16x128xf32>
    %7 = arith.maximumf %5, %6 : vector<16x128xf32>
    %8 = arith.truncf %7 : vector<16x128xf32> to vector<16x128xbf16>
    %c0_6 = arith.constant 0 : index
    %c0_7 = arith.constant 0 : index
    %9 = vector.load %arg5[%c0_6, %c0_7] : memref<128x128xbf16, #tpu.memory_space<vmem>>, vector<128x128xbf16>
    %cst_8 = arith.constant dense<0.000000e+00> : vector<16x128xf32>
    %10 = tpu.matmul %8, %9, %cst_8 {dimension_numbers = #tpu.dot_dimension_numbers<[1], [0], [0], [1], [0, 0, 1, 1], [], []>} : vector<16x128xbf16>, vector<128x128xbf16>, vector<16x128xf32> -> vector<16x128xf32>
    %c0_i32 = arith.constant 0 : i32
    %11 = arith.cmpi eq, %arg1, %c0_i32 : i32
    %12 = arith.extui %11 : i1 to i32
    %c0_i32_9 = arith.constant 0 : i32
    %13 = arith.cmpi ne, %12, %c0_i32_9 : i32
    scf.if %13 {
      %c0_14 = arith.constant 0 : index
      %c0_15 = arith.constant 0 : index
      %20 = vector.load %arg8[%c0_14, %c0_15] : memref<16x128xf32, #tpu.memory_space<vmem>>, vector<16x128xf32>
      tpu.vector_store %arg8[%c0_14, %c0_15], %10 {strides = array<i32>} : memref<16x128xf32, #tpu.memory_space<vmem>>, vector<16x128xf32>,
    } else {
    }
    %c0_i32_10 = arith.constant 0 : i32
    %14 = arith.cmpi sgt, %arg1, %c0_i32_10 : i32
    %15 = arith.extui %14 : i1 to i32
    %c0_i32_11 = arith.constant 0 : i32
    %16 = arith.cmpi ne, %15, %c0_i32_11 : i32
    scf.if %16 {
      %c0_14 = arith.constant 0 : index
      %c0_15 = arith.constant 0 : index
      %20 = vector.load %arg8[%c0_14, %c0_15] : memref<16x128xf32, #tpu.memory_space<vmem>>, vector<16x128xf32>
      %21 = arith.addf %20, %10 : vector<16x128xf32>
      %c0_16 = arith.constant 0 : index
      %c0_17 = arith.constant 0 : index
      %22 = vector.load %arg8[%c0_16, %c0_17] : memref<16x128xf32, #tpu.memory_space<vmem>>, vector<16x128xf32>
      tpu.vector_store %arg8[%c0_16, %c0_17], %21 {strides = array<i32>} : memref<16x128xf32, #tpu.memory_space<vmem>>, vector<16x128xf32>,
    } else {
    }
    %c0_i32_12 = arith.constant 0 : i32
    %17 = arith.cmpi eq, %arg1, %c0_i32_12 : i32
    %18 = arith.extui %17 : i1 to i32
    %c0_i32_13 = arith.constant 0 : i32
    %19 = arith.cmpi ne, %18, %c0_i32_13 : i32
    scf.if %19 {
      %c0_14 = arith.constant 0 : index
      %c0_15 = arith.constant 0 : index
      %20 = vector.load %arg8[%c0_14, %c0_15] : memref<16x128xf32, #tpu.memory_space<vmem>>, vector<16x128xf32>
      %c0_16 = arith.constant 0 : index
      %c0_17 = arith.constant 0 : index
      %21 = vector.load %arg6[%c0_16, %c0_17] : memref<1x128xf32, #tpu.memory_space<vmem>>, vector<1x128xf32>
      %22 = vector.broadcast %21 : vector<1x128xf32> to vector<16x128xf32>
      %23 = arith.addf %20, %22 : vector<16x128xf32>
      %c0_18 = arith.constant 0 : index
      %c0_19 = arith.constant 0 : index
      %24 = vector.load %arg7[%c0_18, %c0_19] : memref<16x128xf32, #tpu.memory_space<vmem>>, vector<16x128xf32>
      tpu.vector_store %arg7[%c0_18, %c0_19], %23 {strides = array<i32>} : memref<16x128xf32, #tpu.memory_space<vmem>>, vector<16x128xf32>,
    } else {
    }
    return
  }
  func.func @transform_0(%arg0: i32, %arg1: i32) -> (i32, i32) {
    %c0_i32 = arith.constant 0 : i32
    %c0_i32_0 = arith.constant 0 : i32
    return %arg0, %c0_i32 : i32, i32
  }
  func.func @transform_1(%arg0: i32, %arg1: i32) -> (i32, i32) {
    %c0_i32 = arith.constant 0 : i32
    %c0_i32_0 = arith.constant 0 : i32
    return %c0_i32, %arg1 : i32, i32
  }
  func.func @transform_2(%arg0: i32, %arg1: i32) -> (i32, i32) {
    %c0_i32 = arith.constant 0 : i32
    %c0_i32_0 = arith.constant 0 : i32
    return %c0_i32, %arg1 : i32, i32
  }
  func.func @transform_3(%arg0: i32, %arg1: i32) -> (i32, i32) {
    %c0_i32 = arith.constant 0 : i32
    %c0_i32_0 = arith.constant 0 : i32
    return %arg1, %c0_i32 : i32, i32
  }
  func.func @transform_4(%arg0: i32, %arg1: i32) -> (i32, i32) {
    %c0_i32 = arith.constant 0 : i32
    %c0_i32_0 = arith.constant 0 : i32
    %c0_i32_1 = arith.constant 0 : i32
    return %c0_i32, %c0_i32_0 : i32, i32
  }
  func.func @transform_5(%arg0: i32, %arg1: i32) -> (i32, i32) {
    %c0_i32 = arith.constant 0 : i32
    %c0_i32_0 = arith.constant 0 : i32
    return %arg0, %c0_i32 : i32, i32
  }
}

</mosaic_0001>

<llo_original>
// kernel: tpu_custom_call.1
$region0: #{tpu_custom_call.1}
  #allocation0 [shape = 'u32[]', space=smem, size = 0x4, offset = 0x4, fixed_abs, tag = 'smem constant byte address 0x4 - core index']
  #allocation1 [shape = 'u32[144,128]{1,0:T(1,128)}', space=vmem, size = 0x12000, scoped, tag = 'internal scratch']
  #allocation2 [shape = 'f32[16,128]{1,0:T(8,128)}', space=vmem, size = 0x2000, scoped, tag = 'scratch operand']
  %s0 = inlined_call_operand.hbm [shape: bf16[16,128], index: 0, kind: input, shape index: {}]
  %s1 = inlined_call_operand.hbm [shape: bf16[128,128], index: 1, kind: input, shape index: {}]
  %s2 = inlined_call_operand.vmem [shape: f32[1,128], index: 2, kind: input, shape index: {}]
  %s3 = inlined_call_operand.hbm [shape: bf16[128,128], index: 3, kind: input, shape index: {}]
  %s4 = inlined_call_operand.vmem [shape: f32[1,128], index: 4, kind: input, shape index: {}]
  %s5 = inlined_call_operand.hbm [shape: f32[16,128], index: 5, kind: output, shape index: {}]
  %s6 = sld [smem:[#allocation0]]
  $region54: #{tpu_custom_call.1} parent=0
    _
  %s8 = ssub.s32 1, %s6
  %s9 = scalar_select 0, %s8, %s6
  $region1: #{tpu_custom_call.1} parent=0
    #allocation3 [shape = 'u8[4096]{0}', space=vmem, size = 0x1000, scoped, tag = 'input window, operand 0, single buffered']
    #allocation4 [shape = 's32[1]{0}', space=sflag, size = 0x4, scoped, tag = 'scoped memory for tpu_custom_call.1']
    #allocation5 [shape = 's32[1]{0}', space=sflag, size = 0x4, scoped, tag = 'scoped memory for tpu_custom_call.1']
    #allocation6 [shape = 'u8[32768]{0}', space=vmem, size = 0x8000, scoped, tag = 'input window, operand 1, single buffered']
    #allocation7 [shape = 's32[1]{0}', space=sflag, size = 0x4, scoped, tag = 'scoped memory for tpu_custom_call.1']
    #allocation8 [shape = 'u8[32768]{0}', space=vmem, size = 0x8000, scoped, tag = 'input window, operand 3, single buffered']
    #allocation9 [shape = 'u8[8192]{0}', space=vmem, size = 0x2000, scoped, tag = 'output window, operand 0, single buffered']
    %10 = vsyncpa [#allocation4], 0
    %11 = vsyncpa [#allocation7], 0
    %12 = vsyncpa [#allocation5], 0
    // Predicated region
    $region2: #{tpu_custom_call.1} parent=1 // pred_check
      _
    $region3: #{tpu_custom_call.1} parent=1 // pred_check_branch
      %14 = sbr.rel (0) target = $region5
    $region4: #{tpu_custom_call.1} parent=1 // pred_region
      %s16 = ssub.s32 128, 128
      %17 = vsyncadd [#allocation4], %s16
      %s18 = sshll.u32 [#allocation3], 4
      %s19 = int_to_ptr.vmem [resolvable:$true] %s18
      %24 = dma.hbm_to_vmem [thread:$0]  %s0, 128, %s19, [#allocation4], 64, 64, 4
    $region5: #{tpu_custom_call.1} parent=1 // pred_fallthru
      _
    // Predicated region
    $region6: #{tpu_custom_call.1} parent=1 // pred_check
      _
    $region7: #{tpu_custom_call.1} parent=1 // pred_check_branch
      %26 = sbr.rel (0) target = $region9
    $region8: #{tpu_custom_call.1} parent=1 // pred_region
      %s28 = ssub.s32 1024, 1024
      %29 = vsyncadd [#allocation7], %s28
      %s30 = sshll.u32 [#allocation6], 4
      %s31 = int_to_ptr.vmem [resolvable:$true] %s30
      %36 = dma.hbm_to_vmem [thread:$0]  %s1, 1024, %s31, [#allocation7], 64, 64, 4
    $region9: #{tpu_custom_call.1} parent=1 // pred_fallthru
      _
    // Predicated region
    $region10: #{tpu_custom_call.1} parent=1 // pred_check
      _
    $region11: #{tpu_custom_call.1} parent=1 // pred_check_branch
      %38 = sbr.rel (0) target = $region13
    $region12: #{tpu_custom_call.1} parent=1 // pred_region
      _
    $region13: #{tpu_custom_call.1} parent=1 // pred_fallthru
      _
    // Predicated region
    $region14: #{tpu_custom_call.1} parent=1 // pred_check
      _
    $region15: #{tpu_custom_call.1} parent=1 // pred_check_branch
      %40 = sbr.rel (0) target = $region17
    $region16: #{tpu_custom_call.1} parent=1 // pred_region
      %s42 = ssub.s32 1024, 1024
      %43 = vsyncadd [#allocation7], %s42
      %s44 = sshll.u32 [#allocation8], 4
      %s45 = int_to_ptr.vmem [resolvable:$true] %s44
      %50 = dma.hbm_to_vmem [thread:$0]  %s3, 1024, %s45, [#allocation7], 64, 64, 4
    $region17: #{tpu_custom_call.1} parent=1 // pred_fallthru
      _
    // Predicated region
    $region18: #{tpu_custom_call.1} parent=1 // pred_check
      _
    $region19: #{tpu_custom_call.1} parent=1 // pred_check_branch
      %52 = sbr.rel (0) target = $region21
    $region20: #{tpu_custom_call.1} parent=1 // pred_region
      _
    $region21: #{tpu_custom_call.1} parent=1 // pred_fallthru
      _
    // Predicated region
    $region22: #{tpu_custom_call.1} parent=1 // pred_check
      _
    $region23: #{tpu_custom_call.1} parent=1 // pred_check_branch
      %54 = sbr.rel (0) target = $region25
    $region24: #{tpu_custom_call.1} parent=1 // pred_region
      %55 = dma.done [#allocation4], 128
    $region25: #{tpu_custom_call.1} parent=1 // pred_fallthru
      _
    // Predicated region
    $region26: #{tpu_custom_call.1} parent=1 // pred_check
      _
    $region27: #{tpu_custom_call.1} parent=1 // pred_check_branch
      %57 = sbr.rel (0) target = $region29
    $region28: #{tpu_custom_call.1} parent=1 // pred_region
      %58 = dma.done [#allocation7], 1024
    $region29: #{tpu_custom_call.1} parent=1 // pred_fallthru
      _
    // Predicated region
    $region30: #{tpu_custom_call.1} parent=1 // pred_check
      _
    $region31: #{tpu_custom_call.1} parent=1 // pred_check_branch
      %60 = sbr.rel (0) target = $region33
    $region32: #{tpu_custom_call.1} parent=1 // pred_region
      %61 = dma.done [#allocation7], 1024
    $region33: #{tpu_custom_call.1} parent=1 // pred_fallthru
      _
    %v63 = vld [vmem:[#allocation3] sm:$0xf]
    %v64 = vld [vmem:[#allocation3 + $0x4] sm:$0xf]
    %v65 = vld [vmem:[#allocation6] sm:$0xf]
    %v66 = vld [vmem:[#allocation6 + $0x4] sm:$0xf]
    %v67 = vld [vmem:[#allocation6 + $0x8] sm:$0xf]
    %v68 = vld [vmem:[#allocation6 + $0xc] sm:$0xf]
    %v69 = vld [vmem:[#allocation6 + $0x10] sm:$0xf]
    %v70 = vld [vmem:[#allocation6 + $0x14] sm:$0xf]
    %v71 = vld [vmem:[#allocation6 + $0x18] sm:$0xf]
    %v72 = vld [vmem:[#allocation6 + $0x1c] sm:$0xf]
    %v73 = vld [vmem:[#allocation6 + $0x20] sm:$0xf]
    %v74 = vld [vmem:[#allocation6 + $0x24] sm:$0xf]
    %v75 = vld [vmem:[#allocation6 + $0x28] sm:$0xf]
    %v76 = vld [vmem:[#allocation6 + $0x2c] sm:$0xf]
    %v77 = vld [vmem:[#allocation6 + $0x30] sm:$0xf]
    %v78 = vld [vmem:[#allocation6 + $0x34] sm:$0xf]
    %v79 = vld [vmem:[#allocation6 + $0x38] sm:$0xf]
    %v80 = vld [vmem:[#allocation6 + $0x3c] sm:$0xf]
    %v81 = vld [vmem:[%s2] sm:$0x1]
    %v83 = vlaneseq
    %v84 = vshrl.u32 %v83, 7
    %v85 = vsub.s32 0, %v84
    %v86 = vrot.slane %v81, %v85
    %v90 = vunpack.c.l.b16 %v63
    %v91 = vunpack.c.l.b16 %v64
    %v92 = vpack.c.b16 %v91, %v90
    %v110 = vunpack.c.l.b16 %v65
    %v111 = vunpack.c.l.b16 %v66
    %v112 = vunpack.c.l.b16 %v67
    %v113 = vunpack.c.l.b16 %v68
    %v114 = vunpack.c.l.b16 %v69
    %v115 = vunpack.c.l.b16 %v70
    %v116 = vunpack.c.l.b16 %v71
    %v117 = vunpack.c.l.b16 %v72
    %v118 = vunpack.c.l.b16 %v73
    %v119 = vunpack.c.l.b16 %v74
    %v120 = vunpack.c.l.b16 %v75
    %v121 = vunpack.c.l.b16 %v76
    %v122 = vunpack.c.l.b16 %v77
    %v123 = vunpack.c.l.b16 %v78
    %v124 = vunpack.c.l.b16 %v79
    %v125 = vunpack.c.l.b16 %v80
    %v126 = vpack.c.b16 %v111, %v110
    %v127 = vpack.c.b16 %v113, %v112
    %v128 = vpack.c.b16 %v115, %v114
    %v129 = vpack.c.b16 %v117, %v116
    %v130 = vpack.c.b16 %v119, %v118
    %v131 = vpack.c.b16 %v121, %v120
    %v132 = vpack.c.b16 %v123, %v122
    %v133 = vpack.c.b16 %v125, %v124
    %142 = vmatprep.subr.bf16.mxu0 0
    %143 = vmatpush1.bf16.msra.mxu0 %v126
    %144 = vmatprep.subr.bf16.mxu0 0
    %145 = vmatpush1.bf16.msra.mxu0 %v127
    %146 = vmatprep.subr.bf16.mxu0 0
    %147 = vmatpush1.bf16.msra.mxu0 %v128
    %148 = vmatprep.subr.bf16.mxu0 0
    %149 = vmatpush1.bf16.msra.mxu0 %v129
    %150 = vmatprep.subr.bf16.mxu0 0
    %151 = vmatpush1.bf16.msra.mxu0 %v130
    %152 = vmatprep.subr.bf16.mxu0 0
    %153 = vmatpush1.bf16.msra.mxu0 %v131
    %154 = vmatprep.subr.bf16.mxu0 0
    %155 = vmatpush1.bf16.msra.mxu0 %v132
    %156 = vmatprep.subr.bf16.mxu0 0
    %157 = vmatpush1.bf16.msra.mxu0 %v133
    %158 = vmatprep.subr.bf16.mxu0 0
    %159 = vmatpush1.bf16.msra.mxu0 0
    %160 = vmatprep.subr.bf16.mxu0 0
    %161 = vmatpush1.bf16.msra.mxu0 0
    %162 = vmatprep.subr.bf16.mxu0 0
    %163 = vmatpush1.bf16.msra.mxu0 0
    %164 = vmatprep.subr.bf16.mxu0 0
    %165 = vmatpush1.bf16.msra.mxu0 0
    %166 = vmatprep.subr.bf16.mxu0 0
    %167 = vmatpush1.bf16.msra.mxu0 0
    %168 = vmatprep.subr.bf16.mxu0 0
    %169 = vmatpush1.bf16.msra.mxu0 0
    %170 = vmatprep.subr.bf16.mxu0 0
    %171 = vmatpush1.bf16.msra.mxu0 0
    %172 = vmatprep.subr.bf16.mxu0 0
    %173 = vmatpush1.bf16.msra.mxu0 0
    %174 = vmatprep.mubr.bf16.mxu0 0
    %175 = vmatmul.mubr.bf16.gmra.mrb[0].mxu0 %v92
    %v176 = vpop.f32.mrb[0].mxu0
    %v177 = vadd.f32 %v86, %v176
    %v178 = vpop.f32.mrb[0].mxu0
    %v179 = vpop.f32.mrb[0].mxu0
    %v180 = vadd.f32 %v86, %v179
    %v181 = vpop.f32.mrb[0].mxu0
    %182 = vdwg.mxu0
    %v183 = vmax.f32 %v177, 0.0
    %v184 = vmax.f32 %v180, 0.0
    %v185 = vpack.c.bf16 %v184, %v183
    %v186 = vld [vmem:[#allocation8] sm:$0xf]
    %v187 = vld [vmem:[#allocation8 + $0x4] sm:$0xf]
    %v188 = vld [vmem:[#allocation8 + $0x8] sm:$0xf]
    %v189 = vld [vmem:[#allocation8 + $0xc] sm:$0xf]
    %v190 = vld [vmem:[#allocation8 + $0x10] sm:$0xf]
    %v191 = vld [vmem:[#allocation8 + $0x14] sm:$0xf]
    %v192 = vld [vmem:[#allocation8 + $0x18] sm:$0xf]
    %v193 = vld [vmem:[#allocation8 + $0x1c] sm:$0xf]
    %v194 = vld [vmem:[#allocation8 + $0x20] sm:$0xf]
    %v195 = vld [vmem:[#allocation8 + $0x24] sm:$0xf]
    %v196 = vld [vmem:[#allocation8 + $0x28] sm:$0xf]
    %v197 = vld [vmem:[#allocation8 + $0x2c] sm:$0xf]
    %v198 = vld [vmem:[#allocation8 + $0x30] sm:$0xf]
    %v199 = vld [vmem:[#allocation8 + $0x34] sm:$0xf]
    %v200 = vld [vmem:[#allocation8 + $0x38] sm:$0xf]
    %v201 = vld [vmem:[#allocation8 + $0x3c] sm:$0xf]
    %v218 = vunpack.c.l.b16 %v186
    %v219 = vunpack.c.l.b16 %v187
    %v220 = vunpack.c.l.b16 %v188
    %v221 = vunpack.c.l.b16 %v189
    %v222 = vunpack.c.l.b16 %v190
    %v223 = vunpack.c.l.b16 %v191
    %v224 = vunpack.c.l.b16 %v192
    %v225 = vunpack.c.l.b16 %v193
    %v226 = vunpack.c.l.b16 %v194
    %v227 = vunpack.c.l.b16 %v195
    %v228 = vunpack.c.l.b16 %v196
    %v229 = vunpack.c.l.b16 %v197
    %v230 = vunpack.c.l.b16 %v198
    %v231 = vunpack.c.l.b16 %v199
    %v232 = vunpack.c.l.b16 %v200
    %v233 = vunpack.c.l.b16 %v201
    %v234 = vpack.c.b16 %v219, %v218
    %v235 = vpack.c.b16 %v221, %v220
    %v236 = vpack.c.b16 %v223, %v222
    %v237 = vpack.c.b16 %v225, %v224
    %v238 = vpack.c.b16 %v227, %v226
    %v239 = vpack.c.b16 %v229, %v228
    %v240 = vpack.c.b16 %v231, %v230
    %v241 = vpack.c.b16 %v233, %v232
    %250 = vmatprep.subr.bf16.mxu0 0
    %251 = vmatpush1.bf16.msra.mxu0 %v234
    %252 = vmatprep.subr.bf16.mxu0 0
    %253 = vmatpush1.bf16.msra.mxu0 %v235
    %254 = vmatprep.subr.bf16.mxu0 0
    %255 = vmatpush1.bf16.msra.mxu0 %v236
    %256 = vmatprep.subr.bf16.mxu0 0
    %257 = vmatpush1.bf16.msra.mxu0 %v237
    %258 = vmatprep.subr.bf16.mxu0 0
    %259 = vmatpush1.bf16.msra.mxu0 %v238
    %260 = vmatprep.subr.bf16.mxu0 0
    %261 = vmatpush1.bf16.msra.mxu0 %v239
    %262 = vmatprep.subr.bf16.mxu0 0
    %263 = vmatpush1.bf16.msra.mxu0 %v240
    %264 = vmatprep.subr.bf16.mxu0 0
    %265 = vmatpush1.bf16.msra.mxu0 %v241
    %266 = vmatprep.subr.bf16.mxu0 0
    %267 = vmatpush1.bf16.msra.mxu0 0
    %268 = vmatprep.subr.bf16.mxu0 0
    %269 = vmatpush1.bf16.msra.mxu0 0
    %270 = vmatprep.subr.bf16.mxu0 0
    %271 = vmatpush1.bf16.msra.mxu0 0
    %272 = vmatprep.subr.bf16.mxu0 0
    %273 = vmatpush1.bf16.msra.mxu0 0
    %274 = vmatprep.subr.bf16.mxu0 0
    %275 = vmatpush1.bf16.msra.mxu0 0
    %276 = vmatprep.subr.bf16.mxu0 0
    %277 = vmatpush1.bf16.msra.mxu0 0
    %278 = vmatprep.subr.bf16.mxu0 0
    %279 = vmatpush1.bf16.msra.mxu0 0
    %280 = vmatprep.subr.bf16.mxu0 0
    %281 = vmatpush1.bf16.msra.mxu0 0
    %282 = vmatprep.mubr.bf16.mxu0 0
    %283 = vmatmul.mubr.bf16.gmra.mrb[0].mxu0 %v185
    %v284 = vpop.f32.mrb[0].mxu0
    %v285 = vadd.f32 0.0, %v284
    %v286 = vpop.f32.mrb[0].mxu0
    %v287 = vpop.f32.mrb[0].mxu0
    %v288 = vadd.f32 0.0, %v287
    %v289 = vpop.f32.mrb[0].mxu0
    %290 = vdwg.mxu0
    %p291 = scmp.eq.s32.totalorder 0, 0
    // Predicated region
    $region34: #{tpu_custom_call.1} parent=1 // pred_check
      %p292 = pneg %p291
    $region35: #{tpu_custom_call.1} parent=1 // pred_check_branch
      %294 = sbr.rel (%p292) target = $region37
    $region36: #{tpu_custom_call.1} parent=1 // pred_region
      %295 = vst [vmem:[#allocation2] sm:$0xff] %v285
      %296 = vst [vmem:[#allocation2 + $0x8] sm:$0xff] %v288
    $region37: #{tpu_custom_call.1} parent=1 // pred_fallthru
      _
    %p297 = scmp.gt.s32.totalorder 0, 0
    // Predicated region
    $region38: #{tpu_custom_call.1} parent=1 // pred_check
      %p298 = pneg %p297
    $region39: #{tpu_custom_call.1} parent=1 // pred_check_branch
      %300 = sbr.rel (%p298) target = $region41
    $region40: #{tpu_custom_call.1} parent=1 // pred_region
      %v301 = vld [vmem:[#allocation2] sm:$0xff]
      %v302 = vld [vmem:[#allocation2 + $0x8] sm:$0xff]
      %v303 = vadd.f32 %v301, %v285
      %v304 = vadd.f32 %v302, %v288
      %305 = vst [vmem:[#allocation2] sm:$0xff] %v303
      %306 = vst [vmem:[#allocation2 + $0x8] sm:$0xff] %v304
    $region41: #{tpu_custom_call.1} parent=1 // pred_fallthru
      _
    // Predicated region
    $region42: #{tpu_custom_call.1} parent=1 // pred_check
      %p307 = pneg %p291
    $region43: #{tpu_custom_call.1} parent=1 // pred_check_branch
      %309 = sbr.rel (%p307) target = $region45
    $region44: #{tpu_custom_call.1} parent=1 // pred_region
      %v310 = vld [vmem:[#allocation2] sm:$0xff]
      %v311 = vld [vmem:[#allocation2 + $0x8] sm:$0xff]
      %v312 = vld [vmem:[%s4] sm:$0x1]
      %v314 = vlaneseq
      %v315 = vshrl.u32 %v314, 7
      %v316 = vsub.s32 0, %v315
      %v317 = vrot.slane %v312, %v316
      %v319 = vadd.f32 %v310, %v317
      %v320 = vadd.f32 %v311, %v317
      %321 = vst [vmem:[#allocation9] sm:$0xff] %v319
      %322 = vst [vmem:[#allocation9 + $0x8] sm:$0xff] %v320
    $region45: #{tpu_custom_call.1} parent=1 // pred_fallthru
      _
    // Predicated region
    $region46: #{tpu_custom_call.1} parent=1 // pred_check
      _
    $region47: #{tpu_custom_call.1} parent=1 // pred_check_branch
      %324 = sbr.rel (0) target = $region49
    $region48: #{tpu_custom_call.1} parent=1 // pred_region
      %s326 = ssub.s32 256, 256
      %327 = vsyncadd [#allocation5], %s326
      %s328 = sshll.u32 [#allocation9], 4
      %s329 = int_to_ptr.vmem [resolvable:$true] %s328
      %334 = dma.vmem_to_hbm [thread:$0]  %s329, 256, %s5, [#allocation5], 128, 128, 8
    $region49: #{tpu_custom_call.1} parent=1 // pred_fallthru
      _
    // Predicated region
    $region50: #{tpu_custom_call.1} parent=1 // pred_check
      _
    $region51: #{tpu_custom_call.1} parent=1 // pred_check_branch
      %336 = sbr.rel (0) target = $region53
    $region52: #{tpu_custom_call.1} parent=1 // pred_region
      %337 = dma.done [#allocation5], 256
    $region53: #{tpu_custom_call.1} parent=1 // pred_fallthru
      _
    %338 = vsyncpa [#allocation4], 1
    %339 = vsyncpa [#allocation7], 1
    %340 = vsyncpa [#allocation5], 1

</llo_original>
